<compile_context>
chip_gen: v7x
topology: tpu7x:2x2x1
jax: 0.10.0
libtpu: 0.0.40
codegen_flags: <defaults>
</compile_context>

<pallas_src>
import jax
import jax.numpy as jnp
from jax import lax
from jax.experimental import pallas as pl
from jax.experimental.pallas import tpu as pltpu

NOISE_FACTOR = 0.05

_COLS = 1024                    # lane-dense last dim (8 x 128 multiple)
_BLOCK_ROWS = 256               # 256 x 1024 f32 = 1 MiB tile: safe on v5e/v6e/v7x
_VMEM_LIMIT = 32 * 1024 * 1024  # explicit scoped-VMEM cap (safe on all generations)


def _round_up(a, b):
    return (a + b - 1) // b * b


def _mix32(x, salt):
    """Cheap 32-bit integer mix (murmur-style finalizer); wraps mod 2**32."""
    x = x + salt
    x = x ^ (x >> 16)
    x = x * jnp.uint32(0x7FEB352D)
    x = x ^ (x >> 15)
    x = x * jnp.uint32(0x846CA68B)
    x = x ^ (x >> 16)
    return x


def _moments_kernel(x_ref, sum_ref, sq_ref):
    """Pass 1: accumulate sum(x) and sum(x*x) over the whole (padded) slab."""
    @pl.when(pl.program_id(0) == 0)
    def _init():
        sum_ref[...] = jnp.zeros_like(sum_ref)
        sq_ref[...] = jnp.zeros_like(sq_ref)

    x = x_ref[...].astype(jnp.float32)
    sum_ref[...] += jnp.sum(x)
    sq_ref[...] += jnp.sum(x * x)


def _noise_kernel(seed_ref, scale_ref, x_ref, o_ref):
    """Pass 2: y = x + |N(0,1)| * scale, streamed tile by tile."""
    x = x_ref[...].astype(jnp.float32)
    block_rows, cols = x.shape
    half = cols // 2

    # Unique per-element counters -> stateless PRNG, 'parallel'-safe grid.
    r_iota = lax.broadcasted_iota(jnp.int32, (block_rows, half), 0).astype(jnp.uint32)
    c_iota = lax.broadcasted_iota(jnp.int32, (block_rows, half), 1).astype(jnp.uint32)
    row0 = (pl.program_id(0) * block_rows).astype(jnp.uint32)
    ctr = (row0 + r_iota) * jnp.uint32(cols) + c_iota

    seed = seed_ref[0].astype(jnp.uint32) * jnp.uint32(0x9E3779B9)
    b1 = _mix32(ctr, seed + jnp.uint32(0x85EBCA6B))
    b2 = _mix32(ctr, seed + jnp.uint32(0xC2B2AE35))

    # 24-bit uniforms: u1 in (0,1) (safe for log), u2 in [0,1).
    u1 = ((b1 >> 8).astype(jnp.float32) + 0.5) * (1.0 / 16777216.0)
    u2 = (b2 >> 8).astype(jnp.float32) * (1.0 / 16777216.0)

    # Box-Muller, using BOTH outputs (halves transcendental work per element).
    r = jnp.sqrt(-2.0 * jnp.log(u1))
    theta = (2.0 * jnp.pi) * u2
    z = jnp.concatenate([r * jnp.cos(theta), r * jnp.sin(theta)], axis=-1)

    scale = scale_ref[0]                      # std * noise_factor (>= 0), from SMEM
    o_ref[...] = (x + jnp.abs(z) * scale).astype(o_ref.dtype)


def gaussian_noise(x, seed, noise_factor=NOISE_FACTOR, training=True):
    """Pallas implementation of GaussianNoise.forward (any input shape)."""
    if not training:
        return x  # eval mode: identity, same as the PyTorch module

    n = x.size
    orig_shape = x.shape

    # Lane-dense padded 2D slab: (rows, 1024), rows a multiple of the block.
    rows = _round_up((n + _COLS - 1) // _COLS, 8)
    if rows > _BLOCK_ROWS:
        block_rows = _BLOCK_ROWS
        rows = _round_up(rows, block_rows)
    else:
        block_rows = rows
    padded_n = rows * _COLS

    xf = x.reshape(-1)
    if padded_n != n:
        xf = jnp.pad(xf, (0, padded_n - n))   # zero padding: does not perturb sums
    x2d = xf.reshape(rows, _COLS)
    grid = (rows // block_rows,)

    # ---- pass 1: tiled global reduction (sum, sum of squares) -------------
    s1, s2 = pl.pallas_call(
        _moments_kernel,
        out_shape=(jax.ShapeDtypeStruct((1, 1), jnp.float32),
                   jax.ShapeDtypeStruct((1, 1), jnp.float32)),
        grid=grid,
        in_specs=[pl.BlockSpec((block_rows, _COLS), lambda i: (i, 0))],
        out_specs=(pl.BlockSpec((1, 1), lambda i: (0, 0)),
                   pl.BlockSpec((1, 1), lambda i: (0, 0))),
        compiler_params=pltpu.CompilerParams(
            dimension_semantics=("arbitrary",),
            vmem_limit_bytes=_VMEM_LIMIT),
    )(x2d)

    # Unbiased variance (torch.std default): (sum(x^2) - sum(x)^2/n) / (n-1)
    nf = jnp.float32(n)
    var = (s2[0, 0] - s1[0, 0] * s1[0, 0] / nf) / jnp.maximum(nf - 1.0, 1.0)
    std = jnp.sqrt(jnp.maximum(var, 0.0))
    scale = (std * jnp.float32(noise_factor)).reshape(1)   # pre-folded scalar
    seed_arr = jnp.asarray([seed], dtype=jnp.int32)

    # ---- pass 2: tiled streaming noise-add ---------------------------------
    out2d = pl.pallas_call(
        _noise_kernel,
        out_shape=jax.ShapeDtypeStruct(x2d.shape, x.dtype),
        grid=grid,
        in_specs=[
            pl.BlockSpec(memory_space=pltpu.MemorySpace.SMEM),    # seed scalar
            pl.BlockSpec(memory_space=pltpu.MemorySpace.SMEM),    # scale scalar
            pl.BlockSpec((block_rows, _COLS), lambda i: (i, 0)),  # x tile
        ],
        out_specs=pl.BlockSpec((block_rows, _COLS), lambda i: (i, 0)),
        compiler_params=pltpu.CompilerParams(
            dimension_semantics=("parallel",),     # uses both TCs on v7x megacore
            vmem_limit_bytes=_VMEM_LIMIT),
    )(seed_arr, scale, x2d)

    return out2d.reshape(-1)[:n].reshape(orig_shape)


if __name__ == "__main__":
    key = jax.random.PRNGKey(0)
    # NCHW input, small shape consistent with an image-branch activation.
    x = jax.random.normal(key, (2, 4, 16, 16), dtype=jnp.float32)

    y = jax.block_until_ready(gaussian_noise(x, seed=0, training=True))

    # Sanity: noise is abs()'d, so output >= input elementwise; shape/dtype kept.
    assert y.shape == x.shape and y.dtype == x.dtype
    assert bool(jnp.all(y >= x))
    # Noise magnitude ~ std * factor * sqrt(2/pi) ~= 0.04 (loose check).
    mean_noise = float(jnp.mean(y - x))
    assert 0.0 < mean_noise < 1.0

    # Eval mode is identity.
    assert bool(jnp.all(gaussian_noise(x, seed=0, training=False) == x))

    print("KERNEL_OK")
</pallas_src>

<mosaic_0001>
module attributes {stable_mosaic.version = 11 : i64} {
  func.func @_moments_kernel(%arg0: i32, %arg1: memref<8x1024xf32, #tpu.memory_space<vmem>>, %arg2: memref<1x1xf32, #tpu.memory_space<vmem>>, %arg3: memref<1x1xf32, #tpu.memory_space<vmem>>) attributes {dimension_semantics = [#tpu.dimension_semantics<arbitrary>], iteration_bounds = array<i64: 1>, scalar_prefetch = 0 : i64, scratch_operands = 0 : i64, tpu.core_type = #tpu.core_type<tc>, window_params = [{transform_indices = @transform_0, window_bounds = array<i64: 8, 1024>}, {pipeline_mode = #tpu.pipeline_mode<synchronous>, transform_indices = @transform_1, window_bounds = array<i64: 1, 1>}, {pipeline_mode = #tpu.pipeline_mode<synchronous>, transform_indices = @transform_2, window_bounds = array<i64: 1, 1>}]} {
    %c0_i32 = arith.constant 0 : i32
    %0 = arith.cmpi eq, %arg0, %c0_i32 : i32
    %1 = arith.extui %0 : i1 to i32
    %c0_i32_0 = arith.constant 0 : i32
    %2 = arith.cmpi ne, %1, %c0_i32_0 : i32
    scf.if %2 {
      %cst_11 = arith.constant 0.000000e+00 : f32
      %21 = vector.broadcast %cst_11 : f32 to vector<1x1xf32>
      %c0_12 = arith.constant 0 : index
      %c0_13 = arith.constant 0 : index
      %22 = vector.load %arg2[%c0_12, %c0_13] : memref<1x1xf32, #tpu.memory_space<vmem>>, vector<1x1xf32>
      tpu.vector_store %arg2[%c0_12, %c0_13], %21 {strides = array<i32>} : memref<1x1xf32, #tpu.memory_space<vmem>>, vector<1x1xf32>,
      %cst_14 = arith.constant 0.000000e+00 : f32
      %23 = vector.broadcast %cst_14 : f32 to vector<1x1xf32>
      %c0_15 = arith.constant 0 : index
      %c0_16 = arith.constant 0 : index
      %24 = vector.load %arg3[%c0_15, %c0_16] : memref<1x1xf32, #tpu.memory_space<vmem>>, vector<1x1xf32>
      tpu.vector_store %arg3[%c0_15, %c0_16], %23 {strides = array<i32>} : memref<1x1xf32, #tpu.memory_space<vmem>>, vector<1x1xf32>,
    } else {
    }
    %c0 = arith.constant 0 : index
    %c0_1 = arith.constant 0 : index
    %3 = vector.load %arg1[%c0, %c0_1] : memref<8x1024xf32, #tpu.memory_space<vmem>>, vector<8x1024xf32>
    %c0_2 = arith.constant 0 : index
    %c0_3 = arith.constant 0 : index
    %4 = vector.load %arg2[%c0_2, %c0_3] : memref<1x1xf32, #tpu.memory_space<vmem>>, vector<1x1xf32>
    %5 = vector.shape_cast %3 : vector<8x1024xf32> to vector<1x8x1024xf32>
    %cst = arith.constant dense<0.000000e+00> : vector<1xf32>
    %6 = vector.multi_reduction <add>, %5, %cst [1, 2] : vector<1x8x1024xf32> to vector<1xf32>
    %7 = vector.shape_cast %6 : vector<1xf32> to vector<1x1x1xf32>
    %8 = vector.extract %7[0, 0, 0] : f32 from vector<1x1x1xf32>
    %9 = vector.broadcast %8 : f32 to vector<1x1xf32>
    %10 = arith.addf %4, %9 : vector<1x1xf32>
    %c0_4 = arith.constant 0 : index
    %c0_5 = arith.constant 0 : index
    %11 = vector.load %arg2[%c0_4, %c0_5] : memref<1x1xf32, #tpu.memory_space<vmem>>, vector<1x1xf32>
    tpu.vector_store %arg2[%c0_4, %c0_5], %10 {strides = array<i32>} : memref<1x1xf32, #tpu.memory_space<vmem>>, vector<1x1xf32>,
    %c0_6 = arith.constant 0 : index
    %c0_7 = arith.constant 0 : index
    %12 = vector.load %arg3[%c0_6, %c0_7] : memref<1x1xf32, #tpu.memory_space<vmem>>, vector<1x1xf32>
    %13 = arith.mulf %3, %3 : vector<8x1024xf32>
    %14 = vector.shape_cast %13 : vector<8x1024xf32> to vector<1x8x1024xf32>
    %cst_8 = arith.constant dense<0.000000e+00> : vector<1xf32>
    %15 = vector.multi_reduction <add>, %14, %cst_8 [1, 2] : vector<1x8x1024xf32> to vector<1xf32>
    %16 = vector.shape_cast %15 : vector<1xf32> to vector<1x1x1xf32>
    %17 = vector.extract %16[0, 0, 0] : f32 from vector<1x1x1xf32>
    %18 = vector.broadcast %17 : f32 to vector<1x1xf32>
    %19 = arith.addf %12, %18 : vector<1x1xf32>
    %c0_9 = arith.constant 0 : index
    %c0_10 = arith.constant 0 : index
    %20 = vector.load %arg3[%c0_9, %c0_10] : memref<1x1xf32, #tpu.memory_space<vmem>>, vector<1x1xf32>
    tpu.vector_store %arg3[%c0_9, %c0_10], %19 {strides = array<i32>} : memref<1x1xf32, #tpu.memory_space<vmem>>, vector<1x1xf32>,
    return
  }
  func.func @transform_0(%arg0: i32) -> (i32, i32) {
    %c0_i32 = arith.constant 0 : i32
    %c0_i32_0 = arith.constant 0 : i32
    return %arg0, %c0_i32 : i32, i32
  }
  func.func @transform_1(%arg0: i32) -> (i32, i32) {
    %c0_i32 = arith.constant 0 : i32
    %c0_i32_0 = arith.constant 0 : i32
    %c0_i32_1 = arith.constant 0 : i32
    return %c0_i32, %c0_i32_0 : i32, i32
  }
  func.func @transform_2(%arg0: i32) -> (i32, i32) {
    %c0_i32 = arith.constant 0 : i32
    %c0_i32_0 = arith.constant 0 : i32
    %c0_i32_1 = arith.constant 0 : i32
    return %c0_i32, %c0_i32_0 : i32, i32
  }
}

</mosaic_0001>

<llo_original>
// kernel: tpu_custom_call.1
$region0: #{tpu_custom_call.1}
  #allocation0 [shape = 'u32[]', space=smem, size = 0x4, offset = 0x4, fixed_abs, tag = 'smem constant byte address 0x4 - core index']
  #allocation1 [shape = 'u32[144,128]{1,0:T(1,128)}', space=vmem, size = 0x12000, scoped, tag = 'internal scratch']
  %s0 = inlined_call_operand.hbm [shape: f32[8,1024], index: 0, kind: input, shape index: {}]
  %s1 = inlined_call_operand.hbm [shape: f32[1,1], index: 1, kind: output, shape index: {0}]
  %s2 = inlined_call_operand.hbm [shape: f32[1,1], index: 2, kind: output, shape index: {1}]
  %3 = xla_tuple %s1, %s2
  %s4 = sld [smem:[#allocation0]]
  $region30: #{tpu_custom_call.1} parent=0
    _
  %s6 = ssub.s32 1, %s4
  %s7 = scalar_select 0, %s6, %s4
  $region1: #{tpu_custom_call.1} parent=0
    #allocation2 [shape = 'u8[32768]{0}', space=vmem, size = 0x8000, scoped, tag = 'input window, operand 0, single buffered']
    #allocation3 [shape = 's32[1]{0}', space=sflag, size = 0x4, scoped, tag = 'scoped memory for tpu_custom_call.1']
    #allocation4 [shape = 's32[1]{0}', space=sflag, size = 0x4, scoped, tag = 'scoped memory for tpu_custom_call.1']
    #allocation5 [shape = 'u8[512]{0}', space=vmem, size = 0x400, scoped, tag = 'output window, operand 0, single buffered']
    #allocation6 [shape = 'u8[512]{0}', space=vmem, size = 0x400, scoped, tag = 'output window, operand 1, single buffered']
    #allocation7 [shape = 's32[1]{0}', space=sflag, size = 0x4, scoped, tag = 'scoped memory for tpu_custom_call.1']
    %8 = vsyncpa [#allocation3], 0
    %9 = vsyncpa [#allocation4], 0
    %10 = vsyncpa [#allocation7], 0
    // Predicated region
    $region2: #{tpu_custom_call.1} parent=1 // pred_check
      _
    $region3: #{tpu_custom_call.1} parent=1 // pred_check_branch
      %12 = sbr.rel (0) target = $region5
    $region4: #{tpu_custom_call.1} parent=1 // pred_region
      %s14 = ssub.s32 1024, 1024
      %15 = vsyncadd [#allocation3], %s14
      %s17 = sshll.u32 [#allocation2], 4
      %s18 = int_to_ptr.vmem [resolvable:$true] %s17
      %20 = dma.hbm_to_vmem [thread:$0]  %s0, 1024, %s18, [#allocation3]
    $region5: #{tpu_custom_call.1} parent=1 // pred_fallthru
      _
    // Predicated region
    $region6: #{tpu_custom_call.1} parent=1 // pred_check
      _
    $region7: #{tpu_custom_call.1} parent=1 // pred_check_branch
      %22 = sbr.rel (0) target = $region9
    $region8: #{tpu_custom_call.1} parent=1 // pred_region
      %23 = dma.done [#allocation3], 1024
    $region9: #{tpu_custom_call.1} parent=1 // pred_fallthru
      _
    %p24 = scmp.eq.s32.totalorder 0, 0
    // Predicated region
    $region10: #{tpu_custom_call.1} parent=1 // pred_check
      %p25 = pneg %p24
    $region11: #{tpu_custom_call.1} parent=1 // pred_check_branch
      %27 = sbr.rel (%p25) target = $region13
    $region12: #{tpu_custom_call.1} parent=1 // pred_region
      %vm28 = vcmask 0
      %29 = vst.msk [vmem:[#allocation5] sm:$0x1] %vm28, 0.0
      %30 = vst.msk [vmem:[#allocation6] sm:$0x1] %vm28, 0.0
    $region13: #{tpu_custom_call.1} parent=1 // pred_fallthru
      _
    %v31 = vld [vmem:[#allocation2] sm:$0xff]
    %v32 = vld [vmem:[#allocation2 + $0x8] sm:$0xff]
    %v33 = vld [vmem:[#allocation2 + $0x10] sm:$0xff]
    %v34 = vld [vmem:[#allocation2 + $0x18] sm:$0xff]
    %v35 = vld [vmem:[#allocation2 + $0x20] sm:$0xff]
    %v36 = vld [vmem:[#allocation2 + $0x28] sm:$0xff]
    %v37 = vld [vmem:[#allocation2 + $0x30] sm:$0xff]
    %v38 = vld [vmem:[#allocation2 + $0x38] sm:$0xff]
    %v39 = vld [vmem:[#allocation5] sm:$0x1]
    %v40 = vadd.f32 %v31, %v32
    %v41 = vadd.f32 %v40, %v33
    %v42 = vadd.f32 %v41, %v34
    %v43 = vadd.f32 %v42, %v35
    %v44 = vadd.f32 %v43, %v36
    %v45 = vadd.f32 %v44, %v37
    %v46 = vadd.f32 %v45, %v38
    %47 = vadd.xlane.f32.xlu0 %v46
    %v48 = vpop.xlane.xlu0 %47
    %v49 = vrot.slane %v48, 4
    %v50 = vadd.f32 %v48, %v49
    %v51 = vrot.slane %v50, 2
    %v52 = vadd.f32 %v50, %v51
    %v53 = vrot.slane %v52, 1
    %v54 = vadd.f32 %v52, %v53
    %s55 = vtos %v54
    %v56 = vstv %s55
    %v57 = vadd.f32 %v39, %v56
    %vm58 = vcmask 0
    %59 = vst.msk [vmem:[#allocation5] sm:$0x1] %vm58, %v57
    %v60 = vld [vmem:[#allocation6] sm:$0x1]
    %v61 = vmul.f32 %v31, %v31
    %v62 = vmul.f32 %v32, %v32
    %v63 = vmul.f32 %v33, %v33
    %v64 = vmul.f32 %v34, %v34
    %v65 = vmul.f32 %v35, %v35
    %v66 = vmul.f32 %v36, %v36
    %v67 = vmul.f32 %v37, %v37
    %v68 = vmul.f32 %v38, %v38
    %v69 = vadd.f32 %v61, %v62
    %v70 = vadd.f32 %v69, %v63
    %v71 = vadd.f32 %v70, %v64
    %v72 = vadd.f32 %v71, %v65
    %v73 = vadd.f32 %v72, %v66
    %v74 = vadd.f32 %v73, %v67
    %v75 = vadd.f32 %v74, %v68
    %76 = vadd.xlane.f32.xlu0 %v75
    %v77 = vpop.xlane.xlu0 %76
    %v78 = vrot.slane %v77, 4
    %v79 = vadd.f32 %v77, %v78
    %v80 = vrot.slane %v79, 2
    %v81 = vadd.f32 %v79, %v80
    %v82 = vrot.slane %v81, 1
    %v83 = vadd.f32 %v81, %v82
    %s84 = vtos %v83
    %v85 = vstv %s84
    %v86 = vadd.f32 %v60, %v85
    %87 = vst.msk [vmem:[#allocation6] sm:$0x1] %vm58, %v86
    // Predicated region
    $region14: #{tpu_custom_call.1} parent=1 // pred_check
      _
    $region15: #{tpu_custom_call.1} parent=1 // pred_check_branch
      %89 = sbr.rel (0) target = $region17
    $region16: #{tpu_custom_call.1} parent=1 // pred_region
      %s91 = ssub.s32 16, 16
      %92 = vsyncadd [#allocation4], %s91
      %s94 = sshll.u32 [#allocation5], 4
      %s95 = int_to_ptr.vmem [resolvable:$true] %s94
      %97 = dma.vmem_to_hbm [thread:$0]  %s95, 16, %s1, [#allocation4]
    $region17: #{tpu_custom_call.1} parent=1 // pred_fallthru
      _
    // Predicated region
    $region18: #{tpu_custom_call.1} parent=1 // pred_check
      _
    $region19: #{tpu_custom_call.1} parent=1 // pred_check_branch
      %99 = sbr.rel (0) target = $region21
    $region20: #{tpu_custom_call.1} parent=1 // pred_region
      %s101 = ssub.s32 16, 16
      %102 = vsyncadd [#allocation7], %s101
      %s104 = sshll.u32 [#allocation6], 4
      %s105 = int_to_ptr.vmem [resolvable:$true] %s104
      %107 = dma.vmem_to_hbm [thread:$0]  %s105, 16, %s2, [#allocation7]
    $region21: #{tpu_custom_call.1} parent=1 // pred_fallthru
      _
    // Predicated region
    $region22: #{tpu_custom_call.1} parent=1 // pred_check
      _
    $region23: #{tpu_custom_call.1} parent=1 // pred_check_branch
      %109 = sbr.rel (0) target = $region25
    $region24: #{tpu_custom_call.1} parent=1 // pred_region
      %110 = dma.done [#allocation4], 16
    $region25: #{tpu_custom_call.1} parent=1 // pred_fallthru
      _
    // Predicated region
    $region26: #{tpu_custom_call.1} parent=1 // pred_check
      _
    $region27: #{tpu_custom_call.1} parent=1 // pred_check_branch
      %112 = sbr.rel (0) target = $region29
    $region28: #{tpu_custom_call.1} parent=1 // pred_region
      %113 = dma.done [#allocation7], 16
    $region29: #{tpu_custom_call.1} parent=1 // pred_fallthru
      _
    %114 = vsyncpa [#allocation3], 1
    %115 = vsyncpa [#allocation4], 1
    %116 = vsyncpa [#allocation7], 1

</llo_original>
